<compile_context>
chip_gen: v7x
topology: tpu7x:2x2x1
jax: 0.10.0
libtpu: 0.0.40
codegen_flags: <defaults>
</compile_context>

<pallas_src>
import functools

import jax
import jax.numpy as jnp
import numpy as np
from jax import lax
from jax.experimental import pallas as pl
from jax.experimental.pallas import tpu as pltpu


def _cross_attn_kernel(vp_ref, x_ref, wq_ref, bq_ref, wk_ref, bk_ref,
                       bp_ref, gamma_ref, o_ref, k_scr,
                       *, hw, hwp, tq, nkc):
    f32 = jnp.float32
    t = pl.program_id(2)

    # Key projection depends only on (b, h): compute once per half (t == 0)
    # into a persistent VMEM scratch (t axis is "arbitrary").
    @pl.when(t == 0)
    def _():
        xh = x_ref[0, 0]                                              # (C, HWp)
        k_scr[...] = (jnp.dot(wk_ref[...], xh, preferred_element_type=f32)
                      + bk_ref[...])                                  # (Cqp, HWp)

    # Query strip (also the residual), sliced from the resident half block.
    off = pl.multiple_of(t * tq, tq)
    xq = x_ref[0, 0, :, pl.ds(off, tq)]                               # (C, TQ)
    q = jnp.dot(wq_ref[...], xq, preferred_element_type=f32) + bq_ref[...]

    # Transposed scores: st[j, i] = <k[:, j], q[:, i]>  -> softmax over axis 0.
    st = lax.dot_general(k_scr[...], q, (((0,), (0,)), ((), ())),
                         preferred_element_type=f32)                  # (HWp, TQ)
    if hwp != hw:                     # mask padded key rows out of the softmax
        row = lax.broadcasted_iota(jnp.int32, (hwp, 1), 0)
        st = st + jnp.where(row < hw, f32(0.0), f32(-1e30))

    m = jnp.max(st, axis=0, keepdims=True)                            # (1, TQ)

    # Chunked exp + PV: EUP exp of chunk i+1 overlaps the MXU matmul of chunk i.
    ck = hwp // nkc
    s = None
    o = None
    for c in range(nkc):
        e_c = jnp.exp(st[c * ck:(c + 1) * ck, :] - m)                 # (ck, TQ)
        s_c = jnp.sum(e_c, axis=0, keepdims=True)                     # (1, TQ)
        o_c = jnp.dot(vp_ref[0, :, pl.ds(c * ck, ck)], e_c,
                      preferred_element_type=f32)                     # (C, TQ)
        s = s_c if s is None else s + s_c
        o = o_c if o is None else o + o_c

    # Deferred softmax normalization (EUP reciprocal + one Newton step).
    r = pl.reciprocal(s, approx=True)
    r = r * (2.0 - s * r)

    # Single fused store (v5e has one vector-store slot).
    out = gamma_ref[0, 0] * (o * r + bp_ref[...]) + xq
    o_ref[0, 0] = out.astype(o_ref.dtype)


def _vmem_budget_bytes():
    """~3/4 of this generation's physical VMEM (v5e/v6e 128 MiB, v7x 64 MiB)."""
    cap = 64 * 1024 * 1024            # conservative fallback (v7x per-TC VMEM)
    try:
        info = pltpu.get_tpu_info()
        got = int(getattr(info, "vmem_capacity_bytes", 0) or 0)
        if got > 0:
            cap = got
    except Exception:
        pass
    return (3 * cap) // 4


def _choose_tq(hwp, c, cqp, nkc, budget):
    """Largest lane-dense query tile that fits the VMEM budget."""
    def live_bytes(t):
        score = hwp * t * 4                         # full (HWp, TQ) score strip
        expc = (hwp // nkc) * t * 4                 # one live exp chunk
        resident = 2 * 2 * c * hwp * 4              # x-half + vp, double-buffered
        kscr = cqp * hwp * 4                        # hoisted key scratch
        outb = 2 * c * t * 4                        # output block, double-buffered
        qb = (cqp + c) * t * 4                      # q projection + strip temps
        return score + expc + resident + kscr + outb + qb

    cands = sorted({t for t in (128, 256, 512, 1024, hwp)
                    if t <= hwp and hwp % t == 0}, reverse=True)
    for t in cands:
        if live_bytes(t) <= budget:
            return t
    # TODO(synk): shapes this large need key-axis online-softmax tiling.
    return cands[-1]


def cross_self_attention(x, params, *, tq=None):
    """x: (B, 2*in_channels, H, W) float32, NCHW, like the PyTorch module."""
    B, C2, H, W = x.shape
    C = C2 // 2
    HW = H * W
    HWP = ((HW + 127) // 128) * 128        # lane-dense spatial dim
    f32 = jnp.float32

    wq = params["wq"].astype(f32); bq = params["bq"].astype(f32)
    wk = params["wk"].astype(f32); bk = params["bk"].astype(f32)
    wv = params["wv"].astype(f32); bv = params["bv"].astype(f32)
    wp = params["wp"].astype(f32); bp = params["bp"].astype(f32)
    gamma = params["gamma"].reshape(1, 1).astype(f32)

    # Pad the tiny q/k channel dim (C//8) up to the f32 sublane granule.
    Cq = wq.shape[0]
    Cqp = max(8, ((Cq + 7) // 8) * 8)
    wq_p = jnp.zeros((Cqp, C), f32).at[:Cq, :].set(wq)
    bq_p = jnp.zeros((Cqp, 1), f32).at[:Cq, 0].set(bq)
    wk_p = jnp.zeros((Cqp, C), f32).at[:Cq, :].set(wk)
    bk_p = jnp.zeros((Cqp, 1), f32).at[:Cq, 0].set(bk)

    # Fold value-conv + ptconv into single channel matmuls (distributive law).
    wp1, wp2 = wp[:, :C], wp[:, C:]
    wpv1 = wp1 @ wv                                   # (C, C)
    wpv2 = wp2 @ wv                                   # (C, C)
    bvp = (wp1 + wp2) @ bv                            # (C,)
    bp_c = bp.reshape(C, 1)

    # (B, 2C, H, W) -> (B, 2, C, HWp): pure reshape + zero lane-pad.
    x4 = x.reshape(B, 2, C, HW).astype(f32)
    if HWP != HW:
        x4 = jnp.pad(x4, ((0, 0), (0, 0), (0, 0), (0, HWP - HW)))

    # Batch-only fused value->ptconv projection: computed once per batch by XLA.
    vp = (jnp.einsum("oc,bcp->bop", wpv1, x4[:, 0])
          + jnp.einsum("oc,bcp->bop", wpv2, x4[:, 1])
          + bvp[None, :, None])                       # (B, C, HWP)

    budget = _vmem_budget_bytes()
    nkc = 4 if HWP >= 512 else (2 if HWP >= 256 else 1)
    if tq is None:
        tq = _choose_tq(HWP, C, Cqp, nkc, budget)
    assert HWP % tq == 0 and (tq % 128 == 0 or tq == HWP)
    nt = HWP // tq

    kernel = functools.partial(_cross_attn_kernel,
                               hw=HW, hwp=HWP, tq=tq, nkc=nkc)

    cost = pl.CostEstimate(
        flops=int(B * 2 * 2 * (Cqp + C) * HWP * HWP),
        transcendentals=int(B * 2 * HWP * HWP),
        bytes_accessed=int(4 * (2 * B * C * HWP      # x halves (read)
                                + B * C * HWP        # vp (read)
                                + 2 * B * C * HWP))) # output (write)

    out = pl.pallas_call(
        kernel,
        out_shape=jax.ShapeDtypeStruct((B, 2, C, HWP), f32),
        grid=(B, 2, nt),
        in_specs=[
            # vp: changes only with b (resident across h, t).
            pl.BlockSpec((1, C, HWP), lambda b, h, t: (b, 0, 0)),
            # attended half: changes only with (b, h); keys + query strips +
            # residual are all sliced from this single resident block.
            pl.BlockSpec((1, 1, C, HWP), lambda b, h, t: (b, h, 0, 0)),
            pl.BlockSpec((Cqp, C), lambda b, h, t: (0, 0)),   # wq (padded)
            pl.BlockSpec((Cqp, 1), lambda b, h, t: (0, 0)),   # bq
            pl.BlockSpec((Cqp, C), lambda b, h, t: (0, 0)),   # wk (padded)
            pl.BlockSpec((Cqp, 1), lambda b, h, t: (0, 0)),   # bk
            pl.BlockSpec((C, 1), lambda b, h, t: (0, 0)),     # bp
            pl.BlockSpec((1, 1), lambda b, h, t: (0, 0),
                         memory_space=pltpu.MemorySpace.SMEM),  # gamma scalar
        ],
        out_specs=pl.BlockSpec((1, 1, C, tq), lambda b, h, t: (b, h, 0, t)),
        scratch_shapes=[pltpu.VMEM((Cqp, HWP), f32)],          # hoisted keys
        compiler_params=pltpu.CompilerParams(
            dimension_semantics=("parallel", "parallel", "arbitrary"),
            vmem_limit_bytes=int(budget)),
        cost_estimate=cost,
    )(vp, x4, wq_p, bq_p, wk_p, bk_p, bp_c, gamma)

    if HWP != HW:
        out = out[..., :HW]
    return out.reshape(B, C2, H, W)


def reference_forward(x, params):
    """Pure-JAX reference reproducing the PyTorch forward exactly."""
    B, C2, H, W = x.shape
    C = C2 // 2
    HW = H * W
    xf = x.reshape(B, C2, HW).astype(jnp.float32)
    x1, x2 = xf[:, :C], xf[:, C:]

    def conv1x1(w, b, xx):
        return jnp.einsum("oc,bcp->bop", w, xx) + b[None, :, None]

    q1 = conv1x1(params["wq"], params["bq"], x1)
    k1 = conv1x1(params["wk"], params["bk"], x1)
    v1 = conv1x1(params["wv"], params["bv"], x1)
    q2 = conv1x1(params["wq"], params["bq"], x2)
    k2 = conv1x1(params["wk"], params["bk"], x2)
    v2 = conv1x1(params["wv"], params["bv"], x2)

    a1 = jax.nn.softmax(jnp.einsum("bci,bcj->bij", q1, k1), axis=-1)
    a2 = jax.nn.softmax(jnp.einsum("bci,bcj->bij", q2, k2), axis=-1)

    out11 = jnp.einsum("bcj,bij->bci", v1, a1)
    out12 = jnp.einsum("bcj,bij->bci", v2, a1)
    out21 = jnp.einsum("bcj,bij->bci", v1, a2)
    out22 = jnp.einsum("bcj,bij->bci", v2, a2)

    o1 = conv1x1(params["wp"], params["bp"], jnp.concatenate([out11, out12], axis=1))
    o2 = conv1x1(params["wp"], params["bp"], jnp.concatenate([out21, out22], axis=1))
    out = params["gamma"][0] * jnp.concatenate([o1, o2], axis=1) + xf
    return out.reshape(B, C2, H, W)


def init_params(key, in_channels):
    C = in_channels
    Cq = C // 8
    ks = jax.random.split(key, 8)
    scale = 0.2
    params = {
        "wq": scale * jax.random.normal(ks[0], (Cq, C), jnp.float32),
        "bq": scale * jax.random.normal(ks[1], (Cq,), jnp.float32),
        "wk": scale * jax.random.normal(ks[2], (Cq, C), jnp.float32),
        "bk": scale * jax.random.normal(ks[3], (Cq,), jnp.float32),
        "wv": scale * jax.random.normal(ks[4], (C, C), jnp.float32),
        "bv": scale * jax.random.normal(ks[5], (C,), jnp.float32),
        "wp": scale * jax.random.normal(ks[6], (C, 2 * C), jnp.float32),
        "bp": scale * jax.random.normal(ks[7], (C,), jnp.float32),
        # PyTorch inits gamma to 0; use a nonzero deterministic value so the
        # attention path actually contributes to the checked output.
        "gamma": jnp.array([0.5], jnp.float32),
    }
    return params


if __name__ == "__main__":
    key = jax.random.PRNGKey(0)
    kx, kp = jax.random.split(key)
    in_channels = 16                       # module in_channels=16 -> x has 32 channels
    params = init_params(kp, in_channels)

    # (shape, forced query tile): cover the lane-pad/mask path, the multi-strip
    # hoisted-keys path, and the chunked exp/PV path.
    cases = [
        ((2, 2 * in_channels, 8, 8), None),     # HW=64  -> padded to 128, key mask
        ((1, 2 * in_channels, 32, 32), 256),    # HW=1024, TQ=256 -> 4 query strips
        ((1, 2 * in_channels, 12, 12), None),   # HW=144 -> padded to 256, 2 chunks
    ]
    for i, (shape, tq) in enumerate(cases):
        xi = jax.random.normal(jax.random.fold_in(kx, i), shape, jnp.float32)
        out = jax.block_until_ready(cross_self_attention(xi, params, tq=tq))
        ref = reference_forward(xi, params)
        np.testing.assert_allclose(np.asarray(out), np.asarray(ref),
                                   rtol=1e-4, atol=1e-4)

    print("KERNEL_OK")
</pallas_src>

<mosaic_0001>
module attributes {stable_mosaic.version = 11 : i64} {
  func.func @_cross_attn_kernel(%arg0: i32, %arg1: i32, %arg2: i32, %arg3: memref<1x16x128xf32, #tpu.memory_space<vmem>>, %arg4: memref<1x1x16x128xf32, #tpu.memory_space<vmem>>, %arg5: memref<8x16xf32, #tpu.memory_space<vmem>>, %arg6: memref<8x1xf32, #tpu.memory_space<vmem>>, %arg7: memref<8x16xf32, #tpu.memory_space<vmem>>, %arg8: memref<8x1xf32, #tpu.memory_space<vmem>>, %arg9: memref<16x1xf32, #tpu.memory_space<vmem>>, %arg10: memref<1x1xf32, #tpu.memory_space<smem>>, %arg11: memref<1x1x16x128xf32, #tpu.memory_space<vmem>>, %arg12: memref<8x128xf32, #tpu.memory_space<vmem>>) attributes {dimension_semantics = [#tpu.dimension_semantics<parallel>, #tpu.dimension_semantics<parallel>, #tpu.dimension_semantics<arbitrary>], iteration_bounds = array<i64: 2, 2, 1>, scalar_prefetch = 0 : i64, scratch_operands = 1 : i64, tpu.core_type = #tpu.core_type<tc>, window_params = [{transform_indices = @transform_0, window_bounds = array<i64: 1, 16, 128>}, {transform_indices = @transform_1, window_bounds = array<i64: 1, 1, 16, 128>}, {pipeline_mode = #tpu.pipeline_mode<synchronous>, transform_indices = @transform_2, window_bounds = array<i64: 8, 16>}, {pipeline_mode = #tpu.pipeline_mode<synchronous>, transform_indices = @transform_3, window_bounds = array<i64: 8, 1>}, {pipeline_mode = #tpu.pipeline_mode<synchronous>, transform_indices = @transform_4, window_bounds = array<i64: 8, 16>}, {pipeline_mode = #tpu.pipeline_mode<synchronous>, transform_indices = @transform_5, window_bounds = array<i64: 8, 1>}, {pipeline_mode = #tpu.pipeline_mode<synchronous>, transform_indices = @transform_6, window_bounds = array<i64: 16, 1>}, {transform_indices = @transform_7, window_bounds = array<i64: 1, 1>}, {transform_indices = @transform_8, window_bounds = array<i64: 1, 1, 16, 128>}]} {
    %c0_i32 = arith.constant 0 : i32
    %0 = arith.cmpi eq, %arg2, %c0_i32 : i32
    %1 = arith.extui %0 : i1 to i32
    %c0_i32_0 = arith.constant 0 : i32
    %2 = arith.cmpi ne, %1, %c0_i32_0 : i32
    scf.if %2 {
      %c0_27 = arith.constant 0 : index
      %c0_28 = arith.constant 0 : index
      %c0_29 = arith.constant 0 : index
      %c0_30 = arith.constant 0 : index
      %50 = vector.load %arg4[%c0_27, %c0_28, %c0_29, %c0_30] : memref<1x1x16x128xf32, #tpu.memory_space<vmem>>, vector<1x1x16x128xf32>
      %51 = vector.shape_cast %50 : vector<1x1x16x128xf32> to vector<16x128xf32>
      %c0_31 = arith.constant 0 : index
      %c0_32 = arith.constant 0 : index
      %52 = vector.load %arg7[%c0_31, %c0_32] : memref<8x16xf32, #tpu.memory_space<vmem>>, vector<8x16xf32>
      %cst_33 = arith.constant dense<0.000000e+00> : vector<8x128xf32>
      %53 = tpu.matmul %52, %51, %cst_33 {dimension_numbers = #tpu.dot_dimension_numbers<[1], [0], [0], [1], [0, 0, 1, 1], [], []>} : vector<8x16xf32>, vector<16x128xf32>, vector<8x128xf32> -> vector<8x128xf32>
      %c0_34 = arith.constant 0 : index
      %c0_35 = arith.constant 0 : index
      %54 = vector.load %arg8[%c0_34, %c0_35] : memref<8x1xf32, #tpu.memory_space<vmem>>, vector<8x1xf32>
      %55 = vector.broadcast %54 : vector<8x1xf32> to vector<8x128xf32>
      %56 = arith.addf %53, %55 : vector<8x128xf32>
      %c0_36 = arith.constant 0 : index
      %c0_37 = arith.constant 0 : index
      %57 = vector.load %arg12[%c0_36, %c0_37] : memref<8x128xf32, #tpu.memory_space<vmem>>, vector<8x128xf32>
      tpu.vector_store %arg12[%c0_36, %c0_37], %56 {strides = array<i32>} : memref<8x128xf32, #tpu.memory_space<vmem>>, vector<8x128xf32>,
    } else {
    }
    %c128_i32 = arith.constant 128 : i32
    %3 = arith.muli %arg2, %c128_i32 : i32
    %4 = tpu.assume_multiple %3, 128 : i32
    %c0 = arith.constant 0 : index
    %c0_1 = arith.constant 0 : index
    %c0_2 = arith.constant 0 : index
    %5 = arith.index_cast %4 : i32 to index
    %6 = vector.load %arg4[%c0, %c0_1, %c0_2, %5] : memref<1x1x16x128xf32, #tpu.memory_space<vmem>>, vector<1x1x16x128xf32>
    %7 = vector.shape_cast %6 : vector<1x1x16x128xf32> to vector<16x128xf32>
    %c0_3 = arith.constant 0 : index
    %c0_4 = arith.constant 0 : index
    %8 = vector.load %arg5[%c0_3, %c0_4] : memref<8x16xf32, #tpu.memory_space<vmem>>, vector<8x16xf32>
    %cst = arith.constant dense<0.000000e+00> : vector<8x128xf32>
    %9 = tpu.matmul %8, %7, %cst {dimension_numbers = #tpu.dot_dimension_numbers<[1], [0], [0], [1], [0, 0, 1, 1], [], []>} : vector<8x16xf32>, vector<16x128xf32>, vector<8x128xf32> -> vector<8x128xf32>
    %c0_5 = arith.constant 0 : index
    %c0_6 = arith.constant 0 : index
    %10 = vector.load %arg6[%c0_5, %c0_6] : memref<8x1xf32, #tpu.memory_space<vmem>>, vector<8x1xf32>
    %11 = vector.broadcast %10 : vector<8x1xf32> to vector<8x128xf32>
    %12 = arith.addf %9, %11 : vector<8x128xf32>
    %c0_7 = arith.constant 0 : index
    %c0_8 = arith.constant 0 : index
    %13 = vector.load %arg12[%c0_7, %c0_8] : memref<8x128xf32, #tpu.memory_space<vmem>>, vector<8x128xf32>
    %cst_9 = arith.constant dense<0.000000e+00> : vector<128x128xf32>
    %14 = tpu.matmul %13, %12, %cst_9 {dimension_numbers = #tpu.dot_dimension_numbers<[0], [0], [1], [1], [0, 1, 1, 1], [], []>} : vector<8x128xf32>, vector<8x128xf32>, vector<128x128xf32> -> vector<128x128xf32>
    %15 = tpu.iota {dimensions = array<i32: 0>} : vector<128x1xi32>
    %c64_i32 = arith.constant 64 : i32
    %16 = vector.broadcast %c64_i32 : i32 to vector<128x1xi32>
    %17 = arith.cmpi slt, %15, %16 : vector<128x1xi32>
    %cst_10 = arith.constant 0.000000e+00 : f32
    %cst_11 = arith.constant -1.000000e+30 : f32
    %18 = vector.broadcast %cst_10 : f32 to vector<128x1xf32>
    %19 = vector.broadcast %cst_11 : f32 to vector<128x1xf32>
    %20 = arith.select %17, %18, %19 : vector<128x1xi1>, vector<128x1xf32>
    %21 = vector.broadcast %20 : vector<128x1xf32> to vector<128x128xf32>
    %22 = arith.addf %14, %21 : vector<128x128xf32>
    %cst_12 = arith.constant dense<0xFF800000> : vector<128xf32>
    %23 = vector.multi_reduction <maximumf>, %22, %cst_12 [0] : vector<128x128xf32> to vector<128xf32>
    %24 = vector.shape_cast %23 : vector<128xf32> to vector<1x128xf32>
    %25 = vector.broadcast %24 : vector<1x128xf32> to vector<128x128xf32>
    %26 = arith.subf %22, %25 : vector<128x128xf32>
    %27 = math.exp %26 : vector<128x128xf32>
    %cst_13 = arith.constant dense<0.000000e+00> : vector<128xf32>
    %28 = vector.multi_reduction <add>, %27, %cst_13 [0] : vector<128x128xf32> to vector<128xf32>
    %29 = vector.shape_cast %28 : vector<128xf32> to vector<1x128xf32>
    %c0_14 = arith.constant 0 : index
    %c0_15 = arith.constant 0 : index
    %c0_16 = arith.constant 0 : index
    %30 = vector.load %arg3[%c0_14, %c0_15, %c0_16] : memref<1x16x128xf32, #tpu.memory_space<vmem>>, vector<1x16x128xf32>
    %31 = vector.shape_cast %30 : vector<1x16x128xf32> to vector<16x128xf32>
    %cst_17 = arith.constant dense<0.000000e+00> : vector<16x128xf32>
    %32 = tpu.matmul %31, %27, %cst_17 {dimension_numbers = #tpu.dot_dimension_numbers<[1], [0], [0], [1], [0, 0, 1, 1], [], []>} : vector<16x128xf32>, vector<128x128xf32>, vector<16x128xf32> -> vector<16x128xf32>
    %33 = tpu.reciprocal %29 {approx = true} : vector<1x128xf32> -> vector<1x128xf32>
    %34 = arith.mulf %29, %33 : vector<1x128xf32>
    %cst_18 = arith.constant 2.000000e+00 : f32
    %35 = vector.broadcast %cst_18 : f32 to vector<1x128xf32>
    %36 = arith.subf %35, %34 : vector<1x128xf32>
    %37 = arith.mulf %33, %36 : vector<1x128xf32>
    %c0_19 = arith.constant 0 : index
    %c0_20 = arith.constant 0 : index
    %38 = memref.load %arg10[%c0_19, %c0_20] : memref<1x1xf32, #tpu.memory_space<smem>>
    %39 = vector.broadcast %37 : vector<1x128xf32> to vector<16x128xf32>
    %40 = arith.mulf %32, %39 : vector<16x128xf32>
    %c0_21 = arith.constant 0 : index
    %c0_22 = arith.constant 0 : index
    %41 = vector.load %arg9[%c0_21, %c0_22] : memref<16x1xf32, #tpu.memory_space<vmem>>, vector<16x1xf32>
    %42 = vector.broadcast %41 : vector<16x1xf32> to vector<16x128xf32>
    %43 = arith.addf %40, %42 : vector<16x128xf32>
    %44 = vector.broadcast %38 : f32 to vector<16x128xf32>
    %45 = arith.mulf %44, %43 : vector<16x128xf32>
    %46 = arith.addf %45, %7 : vector<16x128xf32>
    %c0_23 = arith.constant 0 : index
    %c0_24 = arith.constant 0 : index
    %c0_25 = arith.constant 0 : index
    %c0_26 = arith.constant 0 : index
    %47 = vector.load %arg11[%c0_23, %c0_24, %c0_25, %c0_26] : memref<1x1x16x128xf32, #tpu.memory_space<vmem>>, vector<1x1x16x128xf32>
    %48 = vector.shape_cast %47 : vector<1x1x16x128xf32> to vector<16x128xf32>
    %49 = vector.shape_cast %46 : vector<16x128xf32> to vector<1x1x16x128xf32>
    tpu.vector_store %arg11[%c0_23, %c0_24, %c0_25, %c0_26], %49 {strides = array<i32>} : memref<1x1x16x128xf32, #tpu.memory_space<vmem>>, vector<1x1x16x128xf32>,
    return
  }
  func.func @transform_0(%arg0: i32, %arg1: i32, %arg2: i32) -> (i32, i32, i32) {
    %c0_i32 = arith.constant 0 : i32
    %c0_i32_0 = arith.constant 0 : i32
    %c0_i32_1 = arith.constant 0 : i32
    return %arg0, %c0_i32, %c0_i32_0 : i32, i32, i32
  }
  func.func @transform_1(%arg0: i32, %arg1: i32, %arg2: i32) -> (i32, i32, i32, i32) {
    %c0_i32 = arith.constant 0 : i32
    %c0_i32_0 = arith.constant 0 : i32
    %c0_i32_1 = arith.constant 0 : i32
    return %arg0, %arg1, %c0_i32, %c0_i32_0 : i32, i32, i32, i32
  }
  func.func @transform_2(%arg0: i32, %arg1: i32, %arg2: i32) -> (i32, i32) {
    %c0_i32 = arith.constant 0 : i32
    %c0_i32_0 = arith.constant 0 : i32
    %c0_i32_1 = arith.constant 0 : i32
    return %c0_i32, %c0_i32_0 : i32, i32
  }
  func.func @transform_3(%arg0: i32, %arg1: i32, %arg2: i32) -> (i32, i32) {
    %c0_i32 = arith.constant 0 : i32
    %c0_i32_0 = arith.constant 0 : i32
    %c0_i32_1 = arith.constant 0 : i32
    return %c0_i32, %c0_i32_0 : i32, i32
  }
  func.func @transform_4(%arg0: i32, %arg1: i32, %arg2: i32) -> (i32, i32) {
    %c0_i32 = arith.constant 0 : i32
    %c0_i32_0 = arith.constant 0 : i32
    %c0_i32_1 = arith.constant 0 : i32
    return %c0_i32, %c0_i32_0 : i32, i32
  }
  func.func @transform_5(%arg0: i32, %arg1: i32, %arg2: i32) -> (i32, i32) {
    %c0_i32 = arith.constant 0 : i32
    %c0_i32_0 = arith.constant 0 : i32
    %c0_i32_1 = arith.constant 0 : i32
    return %c0_i32, %c0_i32_0 : i32, i32
  }
  func.func @transform_6(%arg0: i32, %arg1: i32, %arg2: i32) -> (i32, i32) {
    %c0_i32 = arith.constant 0 : i32
    %c0_i32_0 = arith.constant 0 : i32
    %c0_i32_1 = arith.constant 0 : i32
    return %c0_i32, %c0_i32_0 : i32, i32
  }
  func.func @transform_7(%arg0: i32, %arg1: i32, %arg2: i32) -> (i32, i32) {
    %c0_i32 = arith.constant 0 : i32
    %c0_i32_0 = arith.constant 0 : i32
    %c0_i32_1 = arith.constant 0 : i32
    return %c0_i32, %c0_i32_0 : i32, i32
  }
  func.func @transform_8(%arg0: i32, %arg1: i32, %arg2: i32) -> (i32, i32, i32, i32) {
    %c0_i32 = arith.constant 0 : i32
    %c0_i32_0 = arith.constant 0 : i32
    return %arg0, %arg1, %c0_i32, %arg2 : i32, i32, i32, i32
  }
}

</mosaic_0001>

<llo_original>
// kernel: tpu_custom_call.1
$region0: #{tpu_custom_call.1}
  #allocation0 [shape = 'u32[]', space=smem, size = 0x4, offset = 0x4, fixed_abs, tag = 'smem constant byte address 0x4 - core index']
  #allocation1 [shape = 'u32[144,128]{1,0:T(1,128)}', space=vmem, size = 0x12000, scoped, tag = 'internal scratch']
  #allocation2 [shape = 'f32[8,128]{1,0:T(8,128)}', space=vmem, size = 0x1000, scoped, tag = 'scratch operand']
  #allocation3 [shape = 'f32[1,1]{1,0:T(1,128)S(6)}', space=smem, size = 0x200, scoped, tag = 'scoped memory for tpu_custom_call.1']
  %s0 = inlined_call_operand.hbm [shape: f32[2,16,128], index: 0, kind: input, shape index: {}]
  %s1 = inlined_call_operand.hbm [shape: f32[2,2,16,128], index: 1, kind: input, shape index: {}]
  %s2 = inlined_call_operand.vmem [shape: f32[8,16], index: 2, kind: input, shape index: {}]
  %s3 = inlined_call_operand.vmem [shape: f32[8,1], index: 3, kind: input, shape index: {}]
  %s4 = inlined_call_operand.vmem [shape: f32[8,16], index: 4, kind: input, shape index: {}]
  %s5 = inlined_call_operand.vmem [shape: f32[8,1], index: 5, kind: input, shape index: {}]
  %s6 = inlined_call_operand.vmem [shape: f32[16,1], index: 6, kind: input, shape index: {}]
  %s7 = inlined_call_operand.<no memory space> [shape: f32[1,1], index: 7, kind: input, shape index: {}]
  %s8 = inlined_call_operand.hbm [shape: f32[2,2,16,128], index: 8, kind: output, shape index: {}]
  %s9 = sld [smem:[#allocation0]]
  $region77: #{tpu_custom_call.1} parent=0
    _
  %s11 = ssub.s32 1, %s9
  %s12 = scalar_select 0, %s11, %s9
  %13 = sst [smem:[#allocation3]] %s7
  $region1: #{tpu_custom_call.1} parent=0
    #allocation4 [shape = 'u8[16384]{0}', space=vmem, size = 0x4000, scoped, tag = 'input window, operand 0']
    #allocation5 [shape = 's32[2]{0}', space=sflag, size = 0x8, scoped, tag = 'scoped memory for tpu_custom_call.1']
    #allocation6 [shape = 's32[2]{0}', space=sflag, size = 0x8, scoped, tag = 'scoped memory for tpu_custom_call.1']
    #allocation7 [shape = 'u8[16384]{0}', space=vmem, size = 0x4000, scoped, tag = 'input window, operand 1']
    #allocation8 [shape = 's32[2]{0}', space=sflag, size = 0x8, scoped, tag = 'scoped memory for tpu_custom_call.1']
    #allocation9 [shape = 'u8[16384]{0}', space=vmem, size = 0x4000, scoped, tag = 'output window, operand 0']
    %14 = vsyncpa [#allocation5], 0
    %s15 = scalar_lea.sflag [#allocation5], 1
    %16 = vsyncpa %s15, 0
    %17 = vsyncpa [#allocation8], 0
    %s18 = scalar_lea.sflag [#allocation8], 1
    %19 = vsyncpa %s18, 0
    %20 = vsyncpa [#allocation6], 0
    %s21 = scalar_lea.sflag [#allocation6], 1
    %22 = vsyncpa %s21, 0
    loop: start=0, step=1, limit=6
    $region2: #{tpu_custom_call.1} parent=1 // loop_pre_header
      _
    $region3: #{tpu_custom_call.1} parent=1 // loop_header
      %s24 = sphi 0, %s28
      %p25 = scmp.ge.s32.totalorder %s24, 6
      %s31 = sphi 0, %s50
      %s32 = sphi 0, %s46
      %s33 = sphi 0, %s42
      %s34 = sphi 0, %s31
      %s35 = sphi 0, %s32
      %s36 = sphi 0, %s33
      %s37 = sphi 0, %s34
      %s38 = sphi 0, %s35
      %s39 = sphi 0, %s36
      %s53 = sphi 0, %s55
      %s56 = sphi 0, %s53
      %s57 = sphi 0, %s56
      %s73 = sphi 0, %s57
      %s81 = sphi 0, %s83
      %s84 = sphi 0, %s81
      %s85 = sphi 0, %s84
      %s101 = sphi 0, %s85
      %s105 = sphi 0, %s105
      %s107 = sphi 0, %s105
      %s108 = sphi 0, %s107
      %s122 = sphi 0, %s108
      %s126 = sphi 0, %s126
      %s128 = sphi 0, %s126
      %s129 = sphi 0, %s128
      %s143 = sphi 0, %s129
      %s147 = sphi 0, %s147
      %s149 = sphi 0, %s147
      %s150 = sphi 0, %s149
      %s164 = sphi 0, %s150
      %s168 = sphi 0, %s168
      %s170 = sphi 0, %s168
      %s171 = sphi 0, %s170
      %s185 = sphi 0, %s171
      %s189 = sphi 0, %s189
      %s191 = sphi 0, %s189
      %s192 = sphi 0, %s191
      %s206 = sphi 0, %s192
      %s210 = sphi 0, %s210
      %s212 = sphi 0, %s210
      %s213 = sphi 0, %s212
      %s227 = sphi 0, %s213
      %s237 = sphi 0, %s239
      %s240 = sphi 0, %s237
      %s241 = sphi 0, %s240
      %s257 = sphi 0, %s241
    $region4: #{tpu_custom_call.1} parent=1 // loop_header_branch
      %27 = sbr.rel (%p25) target = $region8
    $region5: #{tpu_custom_call.1} parent=1 // loop_body
      %s29 = ssub.s32 %s24, 1
      %s30 = ssub.s32 %s24, 2
      %s40 = sadd.s32 1, %s33
      %p41 = scmp.ge.s32.totalorder %s40, 1
      %s42 = scalar_select %p41, 0, %s40
      %s43 = sadd.s32 1, %s32
      %s44 = scalar_select %p41, %s43, %s32
      %p45 = scmp.ge.s32.totalorder %s44, 2
      %s46 = scalar_select %p45, 0, %s44
      %s47 = sadd.s32 1, %s31
      %s48 = scalar_select %p45, %s47, %s31
      %p49 = scmp.ge.s32.totalorder %s48, 2
      %s50 = scalar_select %p49, 0, %s48
      %s51 = ssub.s32 %s31, %s50
      %p52 = scmp.eq.s32.totalorder %s51, 0
      %s54 = sadd.s32 %s53, 1
      %s55 = scalar_select %p52, %s53, %s54
      %p58 = pneg %p52
      %p59 = scmp.eq.s32.totalorder %s24, 3
      %p60 = por %p58, %p59
      %p61 = scmp.ne.s32.totalorder %s53, %s56
      %p62 = scmp.eq.s32.totalorder %s24, 0
      %p63 = por %p61, %p62
      %p64 = scmp.ne.s32.totalorder %s53, %s56
      %p65 = scmp.eq.s32.totalorder %s29, 3
      %p66 = por %p64, %p65
      %p67 = scmp.ne.s32.totalorder %s56, %s57
      %p68 = scmp.eq.s32.totalorder %s29, 0
      %p69 = por %p67, %p68
      %p70 = scmp.ne.s32.totalorder %s56, %s57
      %p71 = scmp.eq.s32.totalorder %s30, 3
      %p72 = por %p70, %p71
      %p74 = scmp.ne.s32.totalorder %s57, %s73
      %p75 = scmp.eq.s32.totalorder %s30, 0
      %p76 = por %p74, %p75
      %s77 = ssub.s32 %s31, %s50
      %s78 = ssub.s32 %s32, %s46
      %s79 = sor.u32 %s77, %s78
      %p80 = scmp.eq.s32.totalorder %s79, 0
      %s82 = sadd.s32 %s81, 1
      %s83 = scalar_select %p80, %s81, %s82
      %p86 = pneg %p80
      %p87 = scmp.eq.s32.totalorder %s24, 3
      %p88 = por %p86, %p87
      %p89 = scmp.ne.s32.totalorder %s81, %s84
      %p90 = scmp.eq.s32.totalorder %s24, 0
      %p91 = por %p89, %p90
      %p92 = scmp.ne.s32.totalorder %s81, %s84
      %p93 = scmp.eq.s32.totalorder %s29, 3
      %p94 = por %p92, %p93
      %p95 = scmp.ne.s32.totalorder %s84, %s85
      %p96 = scmp.eq.s32.totalorder %s29, 0
      %p97 = por %p95, %p96
      %p98 = scmp.ne.s32.totalorder %s84, %s85
      %p99 = scmp.eq.s32.totalorder %s30, 3
      %p100 = por %p98, %p99
      %p102 = scmp.ne.s32.totalorder %s85, %s101
      %p103 = scmp.eq.s32.totalorder %s30, 0
      %p104 = por %p102, %p103
      %s106 = sadd.s32 %s105, 1
      %p109 = scmp.eq.s32.totalorder %s24, 3
      %p110 = scmp.ne.s32.totalorder %s105, %s107
      %p111 = scmp.eq.s32.totalorder %s24, 0
      %p112 = por %p110, %p111
      %p113 = scmp.ne.s32.totalorder %s105, %s107
      %p114 = scmp.eq.s32.totalorder %s29, 3
      %p115 = por %p113, %p114
      %p116 = scmp.ne.s32.totalorder %s107, %s108
      %p117 = scmp.eq.s32.totalorder %s29, 0
      %p118 = por %p116, %p117
      %p119 = scmp.ne.s32.totalorder %s107, %s108
      %p120 = scmp.eq.s32.totalorder %s30, 3
      %p121 = por %p119, %p120
      %p123 = scmp.ne.s32.totalorder %s108, %s122
      %p124 = scmp.eq.s32.totalorder %s30, 0
      %p125 = por %p123, %p124
      %s127 = sadd.s32 %s126, 1
      %p130 = scmp.eq.s32.totalorder %s24, 3
      %p131 = scmp.ne.s32.totalorder %s126, %s128
      %p132 = scmp.eq.s32.totalorder %s24, 0
      %p133 = por %p131, %p132
      %p134 = scmp.ne.s32.totalorder %s126, %s128
      %p135 = scmp.eq.s32.totalorder %s29, 3
      %p136 = por %p134, %p135
      %p137 = scmp.ne.s32.totalorder %s128, %s129
      %p138 = scmp.eq.s32.totalorder %s29, 0
      %p139 = por %p137, %p138
      %p140 = scmp.ne.s32.totalorder %s128, %s129
      %p141 = scmp.eq.s32.totalorder %s30, 3
      %p142 = por %p140, %p141
      %p144 = scmp.ne.s32.totalorder %s129, %s143
      %p145 = scmp.eq.s32.totalorder %s30, 0
      %p146 = por %p144, %p145
      %s148 = sadd.s32 %s147, 1
      %p151 = scmp.eq.s32.totalorder %s24, 3
      %p152 = scmp.ne.s32.totalorder %s147, %s149
      %p153 = scmp.eq.s32.totalorder %s24, 0
      %p154 = por %p152, %p153
      %p155 = scmp.ne.s32.totalorder %s147, %s149
      %p156 = scmp.eq.s32.totalorder %s29, 3
      %p157 = por %p155, %p156
      %p158 = scmp.ne.s32.totalorder %s149, %s150
      %p159 = scmp.eq.s32.totalorder %s29, 0
      %p160 = por %p158, %p159
      %p161 = scmp.ne.s32.totalorder %s149, %s150
      %p162 = scmp.eq.s32.totalorder %s30, 3
      %p163 = por %p161, %p162
      %p165 = scmp.ne.s32.totalorder %s150, %s164
      %p166 = scmp.eq.s32.totalorder %s30, 0
      %p167 = por %p165, %p166
      %s169 = sadd.s32 %s168, 1
      %p172 = scmp.eq.s32.totalorder %s24, 3
      %p173 = scmp.ne.s32.totalorder %s168, %s170
      %p174 = scmp.eq.s32.totalorder %s24, 0
      %p175 = por %p173, %p174
      %p176 = scmp.ne.s32.totalorder %s168, %s170
      %p177 = scmp.eq.s32.totalorder %s29, 3
      %p178 = por %p176, %p177
      %p179 = scmp.ne.s32.totalorder %s170, %s171
      %p180 = scmp.eq.s32.totalorder %s29, 0
      %p181 = por %p179, %p180
      %p182 = scmp.ne.s32.totalorder %s170, %s171
      %p183 = scmp.eq.s32.totalorder %s30, 3
      %p184 = por %p182, %p183
      %p186 = scmp.ne.s32.totalorder %s171, %s185
      %p187 = scmp.eq.s32.totalorder %s30, 0
      %p188 = por %p186, %p187
      %s190 = sadd.s32 %s189, 1
      %p193 = scmp.eq.s32.totalorder %s24, 3
      %p194 = scmp.ne.s32.totalorder %s189, %s191
      %p195 = scmp.eq.s32.totalorder %s24, 0
      %p196 = por %p194, %p195
      %p197 = scmp.ne.s32.totalorder %s189, %s191
      %p198 = scmp.eq.s32.totalorder %s29, 3
      %p199 = por %p197, %p198
      %p200 = scmp.ne.s32.totalorder %s191, %s192
      %p201 = scmp.eq.s32.totalorder %s29, 0
      %p202 = por %p200, %p201
      %p203 = scmp.ne.s32.totalorder %s191, %s192
      %p204 = scmp.eq.s32.totalorder %s30, 3
      %p205 = por %p203, %p204
      %p207 = scmp.ne.s32.totalorder %s192, %s206
      %p208 = scmp.eq.s32.totalorder %s30, 0
      %p209 = por %p207, %p208
      %s211 = sadd.s32 %s210, 1
      %p214 = scmp.eq.s32.totalorder %s24, 3
      %p215 = scmp.ne.s32.totalorder %s210, %s212
      %p216 = scmp.eq.s32.totalorder %s24, 0
      %p217 = por %p215, %p216
      %p218 = scmp.ne.s32.totalorder %s210, %s212
      %p219 = scmp.eq.s32.totalorder %s29, 3
      %p220 = por %p218, %p219
      %p221 = scmp.ne.s32.totalorder %s212, %s213
      %p222 = scmp.eq.s32.totalorder %s29, 0
      %p223 = por %p221, %p222
      %p224 = scmp.ne.s32.totalorder %s212, %s213
      %p225 = scmp.eq.s32.totalorder %s30, 3
      %p226 = por %p224, %p225
      %p228 = scmp.ne.s32.totalorder %s213, %s227
      %p229 = scmp.eq.s32.totalorder %s30, 0
      %p230 = por %p228, %p229
      %s231 = ssub.s32 %s31, %s50
      %s232 = ssub.s32 %s32, %s46
      %s233 = sor.u32 %s231, %s232
      %s234 = ssub.s32 %s33, %s42
      %s235 = sor.u32 %s233, %s234
      %p236 = scmp.eq.s32.totalorder %s235, 0
      %s238 = sadd.s32 %s237, 1
      %s239 = scalar_select %p236, %s237, %s238
      %p242 = pneg %p236
      %p243 = scmp.eq.s32.totalorder %s24, 3
      %p244 = por %p242, %p243
      %p245 = scmp.ne.s32.totalorder %s237, %s240
      %p246 = scmp.eq.s32.totalorder %s24, 0
      %p247 = por %p245, %p246
      %p248 = scmp.ne.s32.totalorder %s237, %s240
      %p249 = scmp.eq.s32.totalorder %s29, 3
      %p250 = por %p248, %p249
      %p251 = scmp.ne.s32.totalorder %s240, %s241
      %p252 = scmp.eq.s32.totalorder %s29, 0
      %p253 = por %p251, %p252
      %p254 = scmp.ne.s32.totalorder %s240, %s241
      %p255 = scmp.eq.s32.totalorder %s30, 3
      %p256 = por %p254, %p255
      %p258 = scmp.ne.s32.totalorder %s241, %s257
      %p259 = scmp.eq.s32.totalorder %s30, 0
      %p260 = por %p258, %p259
      %p261 = scmp.le.s32.totalorder 1, %s24
      %p262 = scmp.lt.s32.totalorder %s24, 5
      %p263 = pnand %p261, %p262
      %p264 = pneg %p263
      // Predicated region
      $region9: #{tpu_custom_call.1} parent=5 // pred_check
        _
      $region10: #{tpu_custom_call.1} parent=5 // pred_check_branch
        %266 = sbr.rel (%p263) target = $region12
      $region11: #{tpu_custom_call.1} parent=5 // pred_region
        %s267 = ssub.s32 %s24, 1
        // Predicated region
        $region13: #{tpu_custom_call.1} parent=11 // pred_check
          %p268 = pneg %p118
        $region14: #{tpu_custom_call.1} parent=11 // pred_check_branch
          %270 = sbr.rel (%p268) target = $region16
        $region15: #{tpu_custom_call.1} parent=11 // pred_region
          _
        $region16: #{tpu_custom_call.1} parent=11 // pred_fallthru
          _
        // Predicated region
        $region17: #{tpu_custom_call.1} parent=11 // pred_check
          %p271 = pneg %p139
        $region18: #{tpu_custom_call.1} parent=11 // pred_check_branch
          %273 = sbr.rel (%p271) target = $region20
        $region19: #{tpu_custom_call.1} parent=11 // pred_region
          _
        $region20: #{tpu_custom_call.1} parent=11 // pred_fallthru
          _
        // Predicated region
        $region21: #{tpu_custom_call.1} parent=11 // pred_check
          %p274 = pneg %p160
        $region22: #{tpu_custom_call.1} parent=11 // pred_check_branch
          %276 = sbr.rel (%p274) target = $region24
        $region23: #{tpu_custom_call.1} parent=11 // pred_region
          _
        $region24: #{tpu_custom_call.1} parent=11 // pred_fallthru
          _
        // Predicated region
        $region25: #{tpu_custom_call.1} parent=11 // pred_check
          %p277 = pneg %p181
        $region26: #{tpu_custom_call.1} parent=11 // pred_check_branch
          %279 = sbr.rel (%p277) target = $region28
        $region27: #{tpu_custom_call.1} parent=11 // pred_region
          _
        $region28: #{tpu_custom_call.1} parent=11 // pred_fallthru
          _
        // Predicated region
        $region29: #{tpu_custom_call.1} parent=11 // pred_check
          %p280 = pneg %p202
        $region30: #{tpu_custom_call.1} parent=11 // pred_check_branch
          %282 = sbr.rel (%p280) target = $region32
        $region31: #{tpu_custom_call.1} parent=11 // pred_region
          _
        $region32: #{tpu_custom_call.1} parent=11 // pred_fallthru
          _
        // Predicated region
        $region33: #{tpu_custom_call.1} parent=11 // pred_check
          %p283 = pneg %p223
        $region34: #{tpu_custom_call.1} parent=11 // pred_check_branch
          %285 = sbr.rel (%p283) target = $region36
        $region35: #{tpu_custom_call.1} parent=11 // pred_region
          _
        $region36: #{tpu_custom_call.1} parent=11 // pred_fallthru
          _
      $region12: #{tpu_custom_call.1} parent=5 // pred_fallthru
        _
      %p286 = scmp.lt.s32.totalorder %s24, 4
      // Predicated region
      $region37: #{tpu_custom_call.1} parent=5 // pred_check
        %p287 = pneg %p286
      $region38: #{tpu_custom_call.1} parent=5 // pred_check_branch
        %289 = sbr.rel (%p287) target = $region40
      $region39: #{tpu_custom_call.1} parent=5 // pred_region
        // Predicated region
        $region41: #{tpu_custom_call.1} parent=39 // pred_check
          %p290 = pneg %p63
        $region42: #{tpu_custom_call.1} parent=39 // pred_check_branch
          %292 = sbr.rel (%p290) target = $region44
        $region43: #{tpu_custom_call.1} parent=39 // pred_region
          %s293 = sand.u32 %s53, 1
          %s294 = scalar_lea.sflag [#allocation5], %s293
          %s295 = sand.u32 %s53, 1
          %s296 = smul.addr %s295, 16
          %s297 = scalar_lea.vmem [#allocation4], %s296
          %s299 = ssub.s32 256, 256
          %300 = vsyncadd %s294, %s299
          %s301 = smul.addr %s31, 2
          %s302 = smul.addr %s301, 128
          %s303 = scalar_lea.hbm %s0, %s302
          %s304 = sshll.u32 %s297, 4
          %s305 = int_to_ptr.vmem [resolvable:$true] %s304
          %310 = dma.hbm_to_vmem [thread:$0]  %s303, 256, %s305, %s294, 128, 128, 8
        $region44: #{tpu_custom_call.1} parent=39 // pred_fallthru
          _
        // Predicated region
        $region45: #{tpu_custom_call.1} parent=39 // pred_check
          %p311 = pneg %p91
        $region46: #{tpu_custom_call.1} parent=39 // pred_check_branch
          %313 = sbr.rel (%p311) target = $region48
        $region47: #{tpu_custom_call.1} parent=39 // pred_region
          %s314 = sand.u32 %s81, 1
          %s315 = scalar_lea.sflag [#allocation8], %s314
          %s316 = sand.u32 %s81, 1
          %s317 = smul.addr %s316, 16
          %s318 = scalar_lea.vmem [#allocation7], %s317
          %s320 = ssub.s32 256, 256
          %321 = vsyncadd %s315, %s320
          %s322 = smul.addr %s32, 2
          %s323 = smul.addr %s31, 4
          %s324 = sadd.s32 %s322, %s323
          %s325 = smul.addr %s324, 128
          %s326 = scalar_lea.hbm %s1, %s325
          %s327 = sshll.u32 %s318, 4
          %s328 = int_to_ptr.vmem [resolvable:$true] %s327
          %333 = dma.hbm_to_vmem [thread:$0]  %s326, 256, %s328, %s315, 128, 128, 8
        $region48: #{tpu_custom_call.1} parent=39 // pred_fallthru
          _
      $region40: #{tpu_custom_call.1} parent=5 // pred_fallthru
        _
      %p334 = scmp.le.s32.totalorder 1, %s24
      %p335 = scmp.lt.s32.totalorder %s24, 5
      %p336 = pnand %p334, %p335
      %p337 = pneg %p336
      // Predicated region
      $region49: #{tpu_custom_call.1} parent=5 // pred_check
        _
      $region50: #{tpu_custom_call.1} parent=5 // pred_check_branch
        %339 = sbr.rel (%p336) target = $region52
      $region51: #{tpu_custom_call.1} parent=5 // pred_region
        %s340 = ssub.s32 %s24, 1
        %s341 = sand.u32 %s56, 1
        %s342 = scalar_lea.sflag [#allocation5], %s341
        %s343 = sand.u32 %s56, 1
        %s344 = smul.addr %s343, 16
        %s345 = scalar_lea.vmem [#allocation4], %s344
        // Predicated region
        $region53: #{tpu_custom_call.1} parent=51 // pred_check
          %p346 = pneg %p69
        $region54: #{tpu_custom_call.1} parent=51 // pred_check_branch
          %348 = sbr.rel (%p346) target = $region56
        $region55: #{tpu_custom_call.1} parent=51 // pred_region
          %349 = dma.done %s342, 256
        $region56: #{tpu_custom_call.1} parent=51 // pred_fallthru
          _
        %s350 = sand.u32 %s84, 1
        %s351 = scalar_lea.sflag [#allocation8], %s350
        %s352 = sand.u32 %s84, 1
        %s353 = smul.addr %s352, 16
        %s354 = scalar_lea.vmem [#allocation7], %s353
        // Predicated region
        $region57: #{tpu_custom_call.1} parent=51 // pred_check
          %p355 = pneg %p97
        $region58: #{tpu_custom_call.1} parent=51 // pred_check_branch
          %357 = sbr.rel (%p355) target = $region60
        $region59: #{tpu_custom_call.1} parent=51 // pred_region
          %358 = dma.done %s351, 256
        $region60: #{tpu_custom_call.1} parent=51 // pred_fallthru
          _
        %s359 = sand.u32 %s56, 1
        %s360 = scalar_lea.sflag [#allocation5], %s359
        %s361 = sand.u32 %s56, 1
        %s362 = smul.addr %s361, 16
        %s363 = scalar_lea.vmem [#allocation4], %s362
        %p364 = pneg %p69
        %p365 = pneg %p66
        %s366 = sand.u32 %s84, 1
        %s367 = scalar_lea.sflag [#allocation8], %s366
        %s368 = sand.u32 %s84, 1
        %s369 = smul.addr %s368, 16
        %s370 = scalar_lea.vmem [#allocation7], %s369
        %p371 = pneg %p97
        %p372 = pneg %p94
        %p373 = pneg %p118
        %p374 = pneg %p115
        %p375 = pneg %p139
        %p376 = pneg %p136
        %p377 = pneg %p160
        %p378 = pneg %p157
        %p379 = pneg %p181
        %p380 = pneg %p178
        %p381 = pneg %p202
        %p382 = pneg %p199
        %p383 = pneg %p223
        %p384 = pneg %p220
        %p385 = pneg %p253
        %p386 = pneg %p250
        %s387 = sand.u32 %s240, 1
        %s388 = scalar_lea.sflag [#allocation6], %s387
        %s389 = sand.u32 %s240, 1
        %s390 = smul.addr %s389, 16
        %s391 = scalar_lea.vmem [#allocation9], %s390
        %p392 = scmp.eq.s32.totalorder %s36, 0
        // Predicated region
        $region61: #{tpu_custom_call.1} parent=51 // pred_check
          %p393 = pneg %p392
        $region62: #{tpu_custom_call.1} parent=51 // pred_check_branch
          %395 = sbr.rel (%p393) target = $region64
        $region63: #{tpu_custom_call.1} parent=51 // pred_region
          %v396 = vld [vmem:[%s354] sm:$0xff]
          %v397 = vld [vmem:[%s354 + $0x8] sm:$0xff]
          %v398 = vld [vmem:[%s4] sm:$0xff]
          %v399 = vld [vmem:[%s5] sm:$0xff]
          %401 = vset.pattern.permute.xlu0 0
          %402 = vperm.xlu0 %401, %v399
          %v403 = vpop.permute.xlu0 %402
          %vm405 = vcmask 130048
          %v407 = vsel %vm405, %v398, 0
          %409 = vmatprep.subr.mxu0 0.0
          %410 = vmatpush1.msra.mxu0 %v396
          %411 = vmatprep.subr.mxu0 0.0
          %412 = vmatpush1.msra.mxu0 %v397
          %413 = vmatprep.subr.mxu0 0.0
          %414 = vmatpush1.msra.mxu0 0.0
          %415 = vmatprep.subr.mxu0 0.0
          %416 = vmatpush1.msra.mxu0 0.0
          %417 = vmatprep.subr.mxu0 0.0
          %418 = vmatpush1.msra.mxu0 0.0
          %419 = vmatprep.subr.mxu0 0.0
          %420 = vmatpush1.msra.mxu0 0.0
          %421 = vmatprep.subr.mxu0 0.0
          %422 = vmatpush1.msra.mxu0 0.0
          %423 = vmatprep.subr.mxu0 0.0
          %424 = vmatpush1.msra.mxu0 0.0
          %425 = vmatprep.subr.mxu0 0.0
          %426 = vmatpush1.msra.mxu0 0.0
          %427 = vmatprep.subr.mxu0 0.0
          %428 = vmatpush1.msra.mxu0 0.0
          %429 = vmatprep.subr.mxu0 0.0
          %430 = vmatpush1.msra.mxu0 0.0
          %431 = vmatprep.subr.mxu0 0.0
          %432 = vmatpush1.msra.mxu0 0.0
          %433 = vmatprep.subr.mxu0 0.0
          %434 = vmatpush1.msra.mxu0 0.0
          %435 = vmatprep.subr.mxu0 0.0
          %436 = vmatpush1.msra.mxu0 0.0
          %437 = vmatprep.subr.mxu0 0.0
          %438 = vmatpush1.msra.mxu0 0.0
          %439 = vmatprep.subr.mxu0 0.0
          %440 = vmatpush1.msra.mxu0 0.0
          %441 = vmatprep.subr.mxu0 0.0
          %442 = vmatpush1.msra.mxu0 0.0
          %443 = vmatprep.subr.mxu0 0.0
          %444 = vmatpush1.msra.mxu0 0.0
          %445 = vmatprep.subr.mxu0 0.0
          %446 = vmatpush1.msra.mxu0 0.0
          %447 = vmatprep.subr.mxu0 0.0
          %448 = vmatpush1.msra.mxu0 0.0
          %449 = vmatprep.subr.mxu0 0.0
          %450 = vmatpush1.msra.mxu0 0.0
          %451 = vmatprep.subr.mxu0 0.0
          %452 = vmatpush1.msra.mxu0 0.0
          %453 = vmatprep.subr.mxu0 0.0
          %454 = vmatpush1.msra.mxu0 0.0
          %455 = vmatprep.subr.mxu0 0.0
          %456 = vmatpush1.msra.mxu0 0.0
          %457 = vmatprep.subr.mxu0 0.0
          %458 = vmatpush1.msra.mxu0 0.0
          %459 = vmatprep.subr.mxu0 0.0
          %460 = vmatpush1.msra.mxu0 0.0
          %461 = vmatprep.subr.mxu0 0.0
          %462 = vmatpush1.msra.mxu0 0.0
          %463 = vmatprep.subr.mxu0 0.0
          %464 = vmatpush1.msra.mxu0 0.0
          %465 = vmatprep.subr.mxu0 0.0
          %466 = vmatpush1.msra.mxu0 0.0
          %467 = vmatprep.subr.mxu0 0.0
          %468 = vmatpush1.msra.mxu0 0.0
          %469 = vmatprep.subr.mxu0 0.0
          %470 = vmatpush1.msra.mxu0 0.0
          %471 = vmatprep.subr.mxu0 0.0
          %472 = vmatpush1.msra.mxu0 0.0
          %473 = vmatprep.mubr.f32.mxu0 0.0
          %474 = vmatmul.mubr.f32.gmra.mrb[0].mxu0 %v407
          %v475 = vpop.f32.mrb[0].mxu0
          %v476 = vadd.f32 %v403, %v475
          %v477 = vpop.f32.mrb[0].mxu0
          %478 = vdwg.mxu0
          %479 = vst [vmem:[#allocation2] sm:$0xff] %v476
        $region64: #{tpu_custom_call.1} parent=51 // pred_fallthru
          _
        %s480 = smul.u32 %s36, 128
        %s481 = sshra.s32 %s480, 7
        %s482 = sand.u32 %s480, 127
        %s483 = scalar_lea.vmem %s354, %s481 [#allocation7]
        %v484 = vld [vmem:[%s483] sm:$0xff]
        %v485 = vld [vmem:[%s483 + $0x8] sm:$0xff]
        %v486 = vld [vmem:[%s2] sm:$0xff]
        %v487 = vld [vmem:[%s3] sm:$0xff]
        %489 = vset.pattern.permute.xlu0 0
        %490 = vperm.xlu0 %489, %v487
        %v491 = vpop.permute.xlu0 %490
        %vm493 = vcmask 130048
        %v495 = vsel %vm493, %v486, 0
        %497 = vmatprep.subr.mxu0 0.0
        %498 = vmatpush1.msra.mxu0 %v484
        %499 = vmatprep.subr.mxu0 0.0
        %500 = vmatpush1.msra.mxu0 %v485
        %501 = vmatprep.subr.mxu0 0.0
        %502 = vmatpush1.msra.mxu0 0.0
        %503 = vmatprep.subr.mxu0 0.0
        %504 = vmatpush1.msra.mxu0 0.0
        %505 = vmatprep.subr.mxu0 0.0
        %506 = vmatpush1.msra.mxu0 0.0
        %507 = vmatprep.subr.mxu0 0.0
        %508 = vmatpush1.msra.mxu0 0.0
        %509 = vmatprep.subr.mxu0 0.0
        %510 = vmatpush1.msra.mxu0 0.0
        %511 = vmatprep.subr.mxu0 0.0
        %512 = vmatpush1.msra.mxu0 0.0
        %513 = vmatprep.subr.mxu0 0.0
        %514 = vmatpush1.msra.mxu0 0.0
        %515 = vmatprep.subr.mxu0 0.0
        %516 = vmatpush1.msra.mxu0 0.0
        %517 = vmatprep.subr.mxu0 0.0
        %518 = vmatpush1.msra.mxu0 0.0
        %519 = vmatprep.subr.mxu0 0.0
        %520 = vmatpush1.msra.mxu0 0.0
        %521 = vmatprep.subr.mxu0 0.0
        %522 = vmatpush1.msra.mxu0 0.0
        %523 = vmatprep.subr.mxu0 0.0
        %524 = vmatpush1.msra.mxu0 0.0
        %525 = vmatprep.subr.mxu0 0.0
        %526 = vmatpush1.msra.mxu0 0.0
        %527 = vmatprep.subr.mxu0 0.0
        %528 = vmatpush1.msra.mxu0 0.0
        %529 = vmatprep.subr.mxu0 0.0
        %530 = vmatpush1.msra.mxu0 0.0
        %531 = vmatprep.subr.mxu0 0.0
        %532 = vmatpush1.msra.mxu0 0.0
        %533 = vmatprep.subr.mxu0 0.0
        %534 = vmatpush1.msra.mxu0 0.0
        %535 = vmatprep.subr.mxu0 0.0
        %536 = vmatpush1.msra.mxu0 0.0
        %537 = vmatprep.subr.mxu0 0.0
        %538 = vmatpush1.msra.mxu0 0.0
        %539 = vmatprep.subr.mxu0 0.0
        %540 = vmatpush1.msra.mxu0 0.0
        %541 = vmatprep.subr.mxu0 0.0
        %542 = vmatpush1.msra.mxu0 0.0
        %543 = vmatprep.subr.mxu0 0.0
        %544 = vmatpush1.msra.mxu0 0.0
        %545 = vmatprep.subr.mxu0 0.0
        %546 = vmatpush1.msra.mxu0 0.0
        %547 = vmatprep.subr.mxu0 0.0
        %548 = vmatpush1.msra.mxu0 0.0
        %549 = vmatprep.subr.mxu0 0.0
        %550 = vmatpush1.msra.mxu0 0.0
        %551 = vmatprep.subr.mxu0 0.0
        %552 = vmatpush1.msra.mxu0 0.0
        %553 = vmatprep.subr.mxu0 0.0
        %554 = vmatpush1.msra.mxu0 0.0
        %555 = vmatprep.subr.mxu0 0.0
        %556 = vmatpush1.msra.mxu0 0.0
        %557 = vmatprep.subr.mxu0 0.0
        %558 = vmatpush1.msra.mxu0 0.0
        %559 = vmatprep.subr.mxu0 0.0
        %560 = vmatpush1.msra.mxu0 0.0
        %561 = vmatprep.mubr.f32.mxu0 0.0
        %562 = vmatmul.mubr.f32.gmra.mrb[0].mxu0 %v495
        %v563 = vpop.f32.mrb[0].mxu0
        %v564 = vadd.f32 %v491, %v563
        %v565 = vpop.f32.mrb[0].mxu0
        %566 = vdwg.mxu0
        %v567 = vld [vmem:[#allocation2] sm:$0xff]
        %v568 = vlaneseq
        %v569 = vshrl.u32 %v568, 7
        %v570 = vadd.s32 %v569, 8
        %v571 = vadd.s32 %v569, 16
        %v572 = vadd.s32 %v569, 24
        %v573 = vadd.s32 %v569, 32
        %v574 = vadd.s32 %v569, 40
        %v575 = vadd.s32 %v569, 48
        %v576 = vadd.s32 %v569, 56
        %v577 = vadd.s32 %v569, 64
        %v578 = vadd.s32 %v569, 72
        %v579 = vadd.s32 %v569, 80
        %v580 = vadd.s32 %v569, 88
        %v581 = vadd.s32 %v569, 96
        %v582 = vadd.s32 %v569, 104
        %v583 = vadd.s32 %v569, 112
        %v584 = vadd.s32 %v569, 120
        %vm585 = vcmp.lt.s32.totalorder %v569, 64
        %vm586 = vcmp.lt.s32.totalorder %v570, 64
        %vm587 = vcmp.lt.s32.totalorder %v571, 64
        %vm588 = vcmp.lt.s32.totalorder %v572, 64
        %vm589 = vcmp.lt.s32.totalorder %v573, 64
        %vm590 = vcmp.lt.s32.totalorder %v574, 64
        %vm591 = vcmp.lt.s32.totalorder %v575, 64
        %vm592 = vcmp.lt.s32.totalorder %v576, 64
        %vm593 = vcmp.lt.s32.totalorder %v577, 64
        %vm594 = vcmp.lt.s32.totalorder %v578, 64
        %vm595 = vcmp.lt.s32.totalorder %v579, 64
        %vm596 = vcmp.lt.s32.totalorder %v580, 64
        %vm597 = vcmp.lt.s32.totalorder %v581, 64
        %vm598 = vcmp.lt.s32.totalorder %v582, 64
        %vm599 = vcmp.lt.s32.totalorder %v583, 64
        %vm600 = vcmp.lt.s32.totalorder %v584, 64
        %v601 = vsel %vm585, 0.0, -1e+30
        %v602 = vsel %vm586, 0.0, -1e+30
        %v603 = vsel %vm587, 0.0, -1e+30
        %v604 = vsel %vm588, 0.0, -1e+30
        %v605 = vsel %vm589, 0.0, -1e+30
        %v606 = vsel %vm590, 0.0, -1e+30
        %v607 = vsel %vm591, 0.0, -1e+30
        %v608 = vsel %vm592, 0.0, -1e+30
        %v609 = vsel %vm593, 0.0, -1e+30
        %v610 = vsel %vm594, 0.0, -1e+30
        %v611 = vsel %vm595, 0.0, -1e+30
        %v612 = vsel %vm596, 0.0, -1e+30
        %v613 = vsel %vm597, 0.0, -1e+30
        %v614 = vsel %vm598, 0.0, -1e+30
        %v615 = vsel %vm599, 0.0, -1e+30
        %v616 = vsel %vm600, 0.0, -1e+30
        %617 = vxpose.xlu0.b32.start [1/16] %v567, 128
        %618 = vxpose.xlu0.b32.cont [2/16] 0.0, 128
        %619 = vxpose.xlu0.b32.cont [3/16] 0.0, 128
        %620 = vxpose.xlu0.b32.cont [4/16] 0.0, 128
        %621 = vxpose.xlu0.b32.cont [5/16] 0.0, 128
        %622 = vxpose.xlu0.b32.cont [6/16] 0.0, 128
        %623 = vxpose.xlu0.b32.cont [7/16] 0.0, 128
        %624 = vxpose.xlu0.b32.cont [8/16] 0.0, 128
        %625 = vxpose.xlu0.b32.cont [9/16] 0.0, 128
        %626 = vxpose.xlu0.b32.cont [10/16] 0.0, 128
        %627 = vxpose.xlu0.b32.cont [11/16] 0.0, 128
        %628 = vxpose.xlu0.b32.cont [12/16] 0.0, 128
        %629 = vxpose.xlu0.b32.cont [13/16] 0.0, 128
        %630 = vxpose.xlu0.b32.cont [14/16] 0.0, 128
        %631 = vxpose.xlu0.b32.cont [15/16] 0.0, 128
        %632 = vxpose.xlu0.b32.end [16/16] 0.0, 128
        %v633 = vpop.trf.xlu0
        %v634 = vpop.trf.xlu0
        %v635 = vpop.trf.xlu0
        %v636 = vpop.trf.xlu0
        %v637 = vpop.trf.xlu0
        %v638 = vpop.trf.xlu0
        %v639 = vpop.trf.xlu0
        %v640 = vpop.trf.xlu0
        %v641 = vpop.trf.xlu0
        %v642 = vpop.trf.xlu0
        %v643 = vpop.trf.xlu0
        %v644 = vpop.trf.xlu0
        %v645 = vpop.trf.xlu0
        %v646 = vpop.trf.xlu0
        %v647 = vpop.trf.xlu0
        %v648 = vpop.trf.xlu0
        %vm649 = vcmask 64512
        %v651 = vsel %vm649, %v633, 0
        %v654 = vsel %vm649, %v634, 0
        %v657 = vsel %vm649, %v635, 0
        %v660 = vsel %vm649, %v636, 0
        %v663 = vsel %vm649, %v637, 0
        %v666 = vsel %vm649, %v638, 0
        %v669 = vsel %vm649, %v639, 0
        %v672 = vsel %vm649, %v640, 0
        %v675 = vsel %vm649, %v641, 0
        %v678 = vsel %vm649, %v642, 0
        %v681 = vsel %vm649, %v643, 0
        %v684 = vsel %vm649, %v644, 0
        %v687 = vsel %vm649, %v645, 0
        %v690 = vsel %vm649, %v646, 0
        %v693 = vsel %vm649, %v647, 0
        %v696 = vsel %vm649, %v648, 0
        %698 = vmatprep.subr.mxu0 0.0
        %699 = vmatpush1.msra.mxu0 %v564
        %700 = vmatprep.subr.mxu0 0.0
        %701 = vmatpush1.msra.mxu0 0.0
        %702 = vmatprep.subr.mxu0 0.0
        %703 = vmatpush1.msra.mxu0 0.0
        %704 = vmatprep.subr.mxu0 0.0
        %705 = vmatpush1.msra.mxu0 0.0
        %706 = vmatprep.subr.mxu0 0.0
        %707 = vmatpush1.msra.mxu0 0.0
        %708 = vmatprep.subr.mxu0 0.0
        %709 = vmatpush1.msra.mxu0 0.0
        %710 = vmatprep.subr.mxu0 0.0
        %711 = vmatpush1.msra.mxu0 0.0
        %712 = vmatprep.subr.mxu0 0.0
        %713 = vmatpush1.msra.mxu0 0.0
        %714 = vmatprep.subr.mxu0 0.0
        %715 = vmatpush1.msra.mxu0 0.0
        %716 = vmatprep.subr.mxu0 0.0
        %717 = vmatpush1.msra.mxu0 0.0
        %718 = vmatprep.subr.mxu0 0.0
        %719 = vmatpush1.msra.mxu0 0.0
        %720 = vmatprep.subr.mxu0 0.0
        %721 = vmatpush1.msra.mxu0 0.0
        %722 = vmatprep.subr.mxu0 0.0
        %723 = vmatpush1.msra.mxu0 0.0
        %724 = vmatprep.subr.mxu0 0.0
        %725 = vmatpush1.msra.mxu0 0.0
        %726 = vmatprep.subr.mxu0 0.0
        %727 = vmatpush1.msra.mxu0 0.0
        %728 = vmatprep.subr.mxu0 0.0
        %729 = vmatpush1.msra.mxu0 0.0
        %730 = vmatprep.subr.mxu0 0.0
        %731 = vmatpush1.msra.mxu0 0.0
        %732 = vmatprep.subr.mxu0 0.0
        %733 = vmatpush1.msra.mxu0 0.0
        %734 = vmatprep.subr.mxu0 0.0
        %735 = vmatpush1.msra.mxu0 0.0
        %736 = vmatprep.subr.mxu0 0.0
        %737 = vmatpush1.msra.mxu0 0.0
        %738 = vmatprep.subr.mxu0 0.0
        %739 = vmatpush1.msra.mxu0 0.0
        %740 = vmatprep.subr.mxu0 0.0
        %741 = vmatpush1.msra.mxu0 0.0
        %742 = vmatprep.subr.mxu0 0.0
        %743 = vmatpush1.msra.mxu0 0.0
        %744 = vmatprep.subr.mxu0 0.0
        %745 = vmatpush1.msra.mxu0 0.0
        %746 = vmatprep.subr.mxu0 0.0
        %747 = vmatpush1.msra.mxu0 0.0
        %748 = vmatprep.subr.mxu0 0.0
        %749 = vmatpush1.msra.mxu0 0.0
        %750 = vmatprep.subr.mxu0 0.0
        %751 = vmatpush1.msra.mxu0 0.0
        %752 = vmatprep.subr.mxu0 0.0
        %753 = vmatpush1.msra.mxu0 0.0
        %754 = vmatprep.subr.mxu0 0.0
        %755 = vmatpush1.msra.mxu0 0.0
        %756 = vmatprep.subr.mxu0 0.0
        %757 = vmatpush1.msra.mxu0 0.0
        %758 = vmatprep.subr.mxu0 0.0
        %759 = vmatpush1.msra.mxu0 0.0
        %760 = vmatprep.subr.mxu0 0.0
        %761 = vmatpush1.msra.mxu0 0.0
        %762 = vmatprep.mubr.f32.mxu0 0.0
        %763 = vmatmul.mubr.f32.gmra.mrb[0].mxu0 %v651
        %v764 = vpop.f32.mrb[0].mxu0
        %v765 = vadd.f32 %v601, %v764
        %v766 = vpop.f32.mrb[0].mxu0
        %767 = vmatprep.mubr.f32.mxu0 0.0
        %768 = vmatmul.mubr.f32.gmra.mrb[0].mxu0 %v654
        %v769 = vpop.f32.mrb[0].mxu0
        %v770 = vadd.f32 %v602, %v769
        %v771 = vpop.f32.mrb[0].mxu0
        %772 = vmatprep.mubr.f32.mxu0 0.0
        %773 = vmatmul.mubr.f32.gmra.mrb[0].mxu0 %v657
        %v774 = vpop.f32.mrb[0].mxu0
        %v775 = vadd.f32 %v603, %v774
        %v776 = vpop.f32.mrb[0].mxu0
        %777 = vmatprep.mubr.f32.mxu0 0.0
        %778 = vmatmul.mubr.f32.gmra.mrb[0].mxu0 %v660
        %v779 = vpop.f32.mrb[0].mxu0
        %v780 = vadd.f32 %v604, %v779
        %v781 = vpop.f32.mrb[0].mxu0
        %782 = vmatprep.mubr.f32.mxu0 0.0
        %783 = vmatmul.mubr.f32.gmra.mrb[0].mxu0 %v663
        %v784 = vpop.f32.mrb[0].mxu0
        %v785 = vadd.f32 %v605, %v784
        %v786 = vpop.f32.mrb[0].mxu0
        %787 = vmatprep.mubr.f32.mxu0 0.0
        %788 = vmatmul.mubr.f32.gmra.mrb[0].mxu0 %v666
        %v789 = vpop.f32.mrb[0].mxu0
        %v790 = vadd.f32 %v606, %v789
        %v791 = vpop.f32.mrb[0].mxu0
        %792 = vmatprep.mubr.f32.mxu0 0.0
        %793 = vmatmul.mubr.f32.gmra.mrb[0].mxu0 %v669
        %v794 = vpop.f32.mrb[0].mxu0
        %v795 = vadd.f32 %v607, %v794
        %v796 = vpop.f32.mrb[0].mxu0
        %797 = vmatprep.mubr.f32.mxu0 0.0
        %798 = vmatmul.mubr.f32.gmra.mrb[0].mxu0 %v672
        %v799 = vpop.f32.mrb[0].mxu0
        %v800 = vadd.f32 %v608, %v799
        %v801 = vpop.f32.mrb[0].mxu0
        %802 = vmatprep.mubr.f32.mxu0 0.0
        %803 = vmatmul.mubr.f32.gmra.mrb[0].mxu0 %v675
        %v804 = vpop.f32.mrb[0].mxu0
        %v805 = vadd.f32 %v609, %v804
        %v806 = vpop.f32.mrb[0].mxu0
        %807 = vmatprep.mubr.f32.mxu0 0.0
        %808 = vmatmul.mubr.f32.gmra.mrb[0].mxu0 %v678
        %v809 = vpop.f32.mrb[0].mxu0
        %v810 = vadd.f32 %v610, %v809
        %v811 = vpop.f32.mrb[0].mxu0
        %812 = vmatprep.mubr.f32.mxu0 0.0
        %813 = vmatmul.mubr.f32.gmra.mrb[0].mxu0 %v681
        %v814 = vpop.f32.mrb[0].mxu0
        %v815 = vadd.f32 %v611, %v814
        %v816 = vpop.f32.mrb[0].mxu0
        %817 = vmatprep.mubr.f32.mxu0 0.0
        %818 = vmatmul.mubr.f32.gmra.mrb[0].mxu0 %v684
        %v819 = vpop.f32.mrb[0].mxu0
        %v820 = vadd.f32 %v612, %v819
        %v821 = vpop.f32.mrb[0].mxu0
        %822 = vmatprep.mubr.f32.mxu0 0.0
        %823 = vmatmul.mubr.f32.gmra.mrb[0].mxu0 %v687
        %v824 = vpop.f32.mrb[0].mxu0
        %v825 = vadd.f32 %v613, %v824
        %v826 = vpop.f32.mrb[0].mxu0
        %827 = vmatprep.mubr.f32.mxu0 0.0
        %828 = vmatmul.mubr.f32.gmra.mrb[0].mxu0 %v690
        %v829 = vpop.f32.mrb[0].mxu0
        %v830 = vadd.f32 %v614, %v829
        %v831 = vpop.f32.mrb[0].mxu0
        %832 = vmatprep.mubr.f32.mxu0 0.0
        %833 = vmatmul.mubr.f32.gmra.mrb[0].mxu0 %v693
        %v834 = vpop.f32.mrb[0].mxu0
        %v835 = vadd.f32 %v615, %v834
        %v836 = vpop.f32.mrb[0].mxu0
        %837 = vmatprep.mubr.f32.mxu0 0.0
        %838 = vmatmul.mubr.f32.gmra.mrb[0].mxu0 %v696
        %v839 = vpop.f32.mrb[0].mxu0
        %v840 = vadd.f32 %v616, %v839
        %v841 = vpop.f32.mrb[0].mxu0
        %842 = vdwg.mxu0
        %v843 = vmax.f32 %v765, %v785
        %v844 = vmax.f32 %v770, %v790
        %v845 = vmax.f32 %v775, %v795
        %v846 = vmax.f32 %v780, %v800
        %v847 = vmax.f32 %v843, %v805
        %v848 = vmax.f32 %v844, %v810
        %v849 = vmax.f32 %v845, %v815
        %v850 = vmax.f32 %v846, %v820
        %v851 = vmax.f32 %v847, %v825
        %v852 = vmax.f32 %v848, %v830
        %v853 = vmax.f32 %v849, %v835
        %v854 = vmax.f32 %v850, %v840
        %v855 = vmax.f32 %v851, %v852
        %v856 = vmax.f32 %v853, %v854
        %v857 = vmax.f32 %v855, %v856
        %v858 = vrot.slane %v857, 4
        %v859 = vmax.f32 %v857, %v858
        %v860 = vrot.slane %v859, 2
        %v861 = vmax.f32 %v859, %v860
        %v862 = vrot.slane %v861, 1
        %v863 = vmax.f32 %v861, %v862
        %v864 = vsub.f32 %v765, %v863
        %v865 = vsub.f32 %v770, %v863
        %v866 = vsub.f32 %v775, %v863
        %v867 = vsub.f32 %v780, %v863
        %v868 = vsub.f32 %v785, %v863
        %v869 = vsub.f32 %v790, %v863
        %v870 = vsub.f32 %v795, %v863
        %v871 = vsub.f32 %v800, %v863
        %v872 = vsub.f32 %v805, %v863
        %v873 = vsub.f32 %v810, %v863
        %v874 = vsub.f32 %v815, %v863
        %v875 = vsub.f32 %v820, %v863
        %v876 = vsub.f32 %v825, %v863
        %v877 = vsub.f32 %v830, %v863
        %v878 = vsub.f32 %v835, %v863
        %v879 = vsub.f32 %v840, %v863
        %v880 = vmul.f32 %v864, 1.442695
        %v881 = vpow.pop %v880
        %v882 = vmul.f32 %v865, 1.442695
        %v883 = vpow.pop %v882
        %v884 = vmul.f32 %v866, 1.442695
        %v885 = vpow.pop %v884
        %v886 = vmul.f32 %v867, 1.442695
        %v887 = vpow.pop %v886
        %v888 = vmul.f32 %v868, 1.442695
        %v889 = vpow.pop %v888
        %v890 = vmul.f32 %v869, 1.442695
        %v891 = vpow.pop %v890
        %v892 = vmul.f32 %v870, 1.442695
        %v893 = vpow.pop %v892
        %v894 = vmul.f32 %v871, 1.442695
        %v895 = vpow.pop %v894
        %v896 = vmul.f32 %v872, 1.442695
        %v897 = vpow.pop %v896
        %v898 = vmul.f32 %v873, 1.442695
        %v899 = vpow.pop %v898
        %v900 = vmul.f32 %v874, 1.442695
        %v901 = vpow.pop %v900
        %v902 = vmul.f32 %v875, 1.442695
        %v903 = vpow.pop %v902
        %v904 = vmul.f32 %v876, 1.442695
        %v905 = vpow.pop %v904
        %v906 = vmul.f32 %v877, 1.442695
        %v907 = vpow.pop %v906
        %v908 = vmul.f32 %v878, 1.442695
        %v909 = vpow.pop %v908
        %v910 = vmul.f32 %v879, 1.442695
        %v911 = vpow.pop %v910
        %v912 = vadd.f32 %v881, %v883
        %v913 = vadd.f32 %v912, %v885
        %v914 = vadd.f32 %v913, %v887
        %v915 = vadd.f32 %v914, %v889
        %v916 = vadd.f32 %v915, %v891
        %v917 = vadd.f32 %v916, %v893
        %v918 = vadd.f32 %v917, %v895
        %v919 = vadd.f32 %v918, %v897
        %v920 = vadd.f32 %v919, %v899
        %v921 = vadd.f32 %v920, %v901
        %v922 = vadd.f32 %v921, %v903
        %v923 = vadd.f32 %v922, %v905
        %v924 = vadd.f32 %v923, %v907
        %v925 = vadd.f32 %v924, %v909
        %v926 = vadd.f32 %v925, %v911
        %v927 = vrot.slane %v926, 4
        %v928 = vadd.f32 %v926, %v927
        %v929 = vrot.slane %v928, 2
        %v930 = vadd.f32 %v928, %v929
        %v931 = vrot.slane %v930, 1
        %v932 = vadd.f32 %v930, %v931
        %v933 = vld [vmem:[%s345] sm:$0xff]
        %v934 = vld [vmem:[%s345 + $0x8] sm:$0xff]
        %935 = vmatprep.subr.mxu0 0.0
        %936 = vmatpush1.msra.mxu0 %v881
        %937 = vmatprep.subr.mxu0 0.0
        %938 = vmatpush1.msra.mxu0 %v883
        %939 = vmatprep.subr.mxu0 0.0
        %940 = vmatpush1.msra.mxu0 %v885
        %941 = vmatprep.subr.mxu0 0.0
        %942 = vmatpush1.msra.mxu0 %v887
        %943 = vmatprep.subr.mxu0 0.0
        %944 = vmatpush1.msra.mxu0 %v889
        %945 = vmatprep.subr.mxu0 0.0
        %946 = vmatpush1.msra.mxu0 %v891
        %947 = vmatprep.subr.mxu0 0.0
        %948 = vmatpush1.msra.mxu0 %v893
        %949 = vmatprep.subr.mxu0 0.0
        %950 = vmatpush1.msra.mxu0 %v895
        %951 = vmatprep.subr.mxu0 0.0
        %952 = vmatpush1.msra.mxu0 %v897
        %953 = vmatprep.subr.mxu0 0.0
        %954 = vmatpush1.msra.mxu0 %v899
        %955 = vmatprep.subr.mxu0 0.0
        %956 = vmatpush1.msra.mxu0 %v901
        %957 = vmatprep.subr.mxu0 0.0
        %958 = vmatpush1.msra.mxu0 %v903
        %959 = vmatprep.subr.mxu0 0.0
        %960 = vmatpush1.msra.mxu0 %v905
        %961 = vmatprep.subr.mxu0 0.0
        %962 = vmatpush1.msra.mxu0 %v907
        %963 = vmatprep.subr.mxu0 0.0
        %964 = vmatpush1.msra.mxu0 %v909
        %965 = vmatprep.subr.mxu0 0.0
        %966 = vmatpush1.msra.mxu0 %v911
        %967 = vmatprep.subr.mxu0 0.0
        %968 = vmatpush1.msra.mxu0 0.0
        %969 = vmatprep.subr.mxu0 0.0
        %970 = vmatpush1.msra.mxu0 0.0
        %971 = vmatprep.subr.mxu0 0.0
        %972 = vmatpush1.msra.mxu0 0.0
        %973 = vmatprep.subr.mxu0 0.0
        %974 = vmatpush1.msra.mxu0 0.0
        %975 = vmatprep.subr.mxu0 0.0
        %976 = vmatpush1.msra.mxu0 0.0
        %977 = vmatprep.subr.mxu0 0.0
        %978 = vmatpush1.msra.mxu0 0.0
        %979 = vmatprep.subr.mxu0 0.0
        %980 = vmatpush1.msra.mxu0 0.0
        %981 = vmatprep.subr.mxu0 0.0
        %982 = vmatpush1.msra.mxu0 0.0
        %983 = vmatprep.subr.mxu0 0.0
        %984 = vmatpush1.msra.mxu0 0.0
        %985 = vmatprep.subr.mxu0 0.0
        %986 = vmatpush1.msra.mxu0 0.0
        %987 = vmatprep.subr.mxu0 0.0
        %988 = vmatpush1.msra.mxu0 0.0
        %989 = vmatprep.subr.mxu0 0.0
        %990 = vmatpush1.msra.mxu0 0.0
        %991 = vmatprep.subr.mxu0 0.0
        %992 = vmatpush1.msra.mxu0 0.0
        %993 = vmatprep.subr.mxu0 0.0
        %994 = vmatpush1.msra.mxu0 0.0
        %995 = vmatprep.subr.mxu0 0.0
        %996 = vmatpush1.msra.mxu0 0.0
        %997 = vmatprep.subr.mxu0 0.0
        %998 = vmatpush1.msra.mxu0 0.0
        %999 = vmatprep.mubr.f32.mxu0 0.0
        %1000 = vmatmul.mubr.f32.gmra.mrb[0].mxu0 %v933
        %v1001 = vpop.f32.mrb[0].mxu0
        %v1002 = vadd.f32 0.0, %v1001
        %v1003 = vpop.f32.mrb[0].mxu0
        %1004 = vmatprep.mubr.f32.mxu0 0.0
        %1005 = vmatmul.mubr.f32.gmra.mrb[0].mxu0 %v934
        %v1006 = vpop.f32.mrb[0].mxu0
        %v1007 = vadd.f32 0.0, %v1006
        %v1008 = vpop.f32.mrb[0].mxu0
        %1009 = vdwg.mxu0
        %v1010 = vrcp.pop %v932
        %v1011 = vmul.f32 %v932, %v1010
        %v1012 = vsub.f32 2.0, %v1011
        %v1013 = vmul.f32 %v1010, %v1012
        %s1014 = sld [smem:[#allocation3]]
        %v1015 = vmul.f32 %v1002, %v1013
        %v1016 = vmul.f32 %v1007, %v1013
        %v1017 = vld [vmem:[%s6] sm:$0xff]
        %v1018 = vld [vmem:[%s6 + $0x8] sm:$0xff]
        %1020 = vset.pattern.permute.xlu0 0
        %1021 = vperm.xlu0 %1020, %v1017
        %v1022 = vpop.permute.xlu0 %1021
        %1025 = vset.pattern.permute.xlu0 0
        %1026 = vperm.xlu0 %1025, %v1018
        %v1027 = vpop.permute.xlu0 %1026
        %v1029 = vadd.f32 %v1015, %v1022
        %v1030 = vadd.f32 %v1016, %v1027
        %v1031 = vstv %s1014
        %v1032 = vmul.f32 %v1031, %v1029
        %v1033 = vmul.f32 %v1031, %v1030
        %v1034 = vadd.f32 %v1032, %v484
        %v1035 = vadd.f32 %v1033, %v485
        %1036 = vst [vmem:[%s391] sm:$0xff] %v1034
        %1037 = vst [vmem:[%s391 + $0x8] sm:$0xff] %v1035
        %s1038 = sand.u32 %s240, 1
        %s1039 = scalar_lea.sflag [#allocation6], %s1038
        %s1040 = sand.u32 %s240, 1
        %s1041 = smul.addr %s1040, 16
        %s1042 = scalar_lea.vmem [#allocation9], %s1041
        // Predicated region
        $region65: #{tpu_custom_call.1} parent=51 // pred_check
          %p1043 = pneg %p250
        $region66: #{tpu_custom_call.1} parent=51 // pred_check_branch
          %1045 = sbr.rel (%p1043) target = $region68
        $region67: #{tpu_custom_call.1} parent=51 // pred_region
          %s1047 = ssub.s32 256, 256
          %1048 = vsyncadd %s1039, %s1047
          %s1049 = smul.addr %s35, 2
          %s1050 = sadd.s32 %s36, %s1049
          %s1051 = smul.addr %s34, 4
          %s1052 = sadd.s32 %s1050, %s1051
          %s1053 = smul.addr %s1052, 128
          %s1054 = scalar_lea.hbm %s8, %s1053
          %s1055 = sshll.u32 %s1042, 4
          %s1056 = int_to_ptr.vmem [resolvable:$true] %s1055
          %1061 = dma.vmem_to_hbm [thread:$0]  %s1056, 256, %s1054, %s1039, 128, 128, 8
        $region68: #{tpu_custom_call.1} parent=51 // pred_fallthru
          _
      $region52: #{tpu_custom_call.1} parent=5 // pred_fallthru
        _
      %p1062 = scmp.le.s32.totalorder 2, %s24
      // Predicated region
      $region69: #{tpu_custom_call.1} parent=5 // pred_check
        %p1063 = pneg %p1062
      $region70: #{tpu_custom_call.1} parent=5 // pred_check_branch
        %1065 = sbr.rel (%p1063) target = $region72
      $region71: #{tpu_custom_call.1} parent=5 // pred_region
        %s1066 = ssub.s32 %s24, 2
        // Predicated region
        $region73: #{tpu_custom_call.1} parent=71 // pred_check
          %p1067 = pneg %p256
        $region74: #{tpu_custom_call.1} parent=71 // pred_check_branch
          %1069 = sbr.rel (%p1067) target = $region76
        $region75: #{tpu_custom_call.1} parent=71 // pred_region
          %s1070 = sand.u32 %s241, 1
          %s1071 = scalar_lea.sflag [#allocation6], %s1070
          %s1072 = sand.u32 %s241, 1
          %s1073 = smul.addr %s1072, 16
          %s1074 = scalar_lea.vmem [#allocation9], %s1073
          %1075 = dma.done %s1071, 256
        $region76: #{tpu_custom_call.1} parent=71 // pred_fallthru
          _
      $region72: #{tpu_custom_call.1} parent=5 // pred_fallthru
        _
    $region6: #{tpu_custom_call.1} parent=1 // loop_footer
      %s28 = sadd.s32 1, %s24
    $region7: #{tpu_custom_call.1} parent=1 // loop_footer_branch
      %23 = sbr.rel target = $region3
    $region8: #{tpu_custom_call.1} parent=1 // loop_exit
      _
    %1076 = vsyncpa [#allocation5], 1
    %s1077 = scalar_lea.sflag [#allocation5], 1
    %1078 = vsyncpa %s1077, 1
    %1079 = vsyncpa [#allocation8], 1
    %s1080 = scalar_lea.sflag [#allocation8], 1
    %1081 = vsyncpa %s1080, 1
    %1082 = vsyncpa [#allocation6], 1
    %s1083 = scalar_lea.sflag [#allocation6], 1
    %1084 = vsyncpa %s1083, 1

</llo_original>
